<compile_context>
chip_gen: v5e
topology: v5e:2x2
jax: 0.10.0
libtpu: 0.0.40
codegen_flags: <defaults>
</compile_context>

<pallas_src>
import math

import jax
import jax.numpy as jnp
from jax.experimental import pallas as pl
from jax.experimental.pallas import tpu as pltpu


# ----------------------------------------------------------------------------
# Kernel 1: soft-assignment + VLAD aggregation (per batch element, (K, D) out)
# ----------------------------------------------------------------------------
def _vlad_agg_kernel(x_ref, wc_ref, b1_ref, w2t_ref, vlad_ref):
    # x_ref:    (1, N, D) bf16  input features for this batch element
    # wc_ref:   (D, K)    bf16  cluster_weights with BN1 scale folded in
    # b1_ref:   (1, K)    f32   BN1 bias (eval-mode affine)
    # w2t_ref:  (K, D)    bf16  cluster_weights2, transposed
    # vlad_ref: (1, K, D) bf16  normalized VLAD descriptor (lane-dense in D)
    x = x_ref[0]                                                      # (N, D)

    # soft-assignment: x @ (wc * bn1_scale) + bn1_bias, softmax over clusters
    act = jnp.dot(x, wc_ref[...], preferred_element_type=jnp.float32)  # (N, K)
    act = act + b1_ref[...]
    m = jnp.max(act, axis=-1, keepdims=True)
    e = jnp.exp(act - m)
    act = e * pl.reciprocal(jnp.sum(e, axis=-1, keepdims=True), approx=True)

    # a[k, d] = (sum_n act[n, k]) * w2t[k, d].  The column-shaped cluster sum
    # is produced directly on sublanes via an MXU dot with a ones column (the
    # MXU is nearly idle here; avoids a lane->sublane relayout of the sum).
    ones_col = jnp.ones((x.shape[0], 1), dtype=jnp.float32)
    a_col = jax.lax.dot_general(act, ones_col, (((0,), (0,)), ((), ())),
                                preferred_element_type=jnp.float32)   # (K, 1)
    a = a_col * w2t_ref[...].astype(jnp.float32)                      # (K, D)

    # vlad[k, d] = sum_n act[n, k] * x[n, d]   (lane-dense (K, D) layout)
    vlad = jax.lax.dot_general(act.astype(x.dtype), x,
                               (((0,), (0,)), ((), ())),
                               preferred_element_type=jnp.float32)    # (K, D)
    vlad = vlad - a

    # intra-normalization: F.normalize over the feature dim -> lane reduction
    ss = jnp.sum(vlad * vlad, axis=-1, keepdims=True)                 # (K, 1)
    vlad = vlad * jax.lax.rsqrt(jnp.maximum(ss, 1e-24))

    # global L2 normalization of the flattened descriptor
    gs = jnp.sum(vlad * vlad, axis=(0, 1), keepdims=True)             # (1, 1)
    vlad = vlad * jax.lax.rsqrt(jnp.maximum(gs, 1e-24))

    vlad_ref[0] = vlad.astype(vlad_ref.dtype)


# ----------------------------------------------------------------------------
# Kernel 2: batched hidden projection (streamed over D*K) + context gating
# ----------------------------------------------------------------------------
def _head_kernel(v_ref, wh_ref, wg_ref, gb_ref, o_ref):
    # grid:   (D*K // tk,)  reduction axis, "arbitrary"
    # v_ref:  (B, tk)  bf16  chunk of the flattened VLAD descriptors
    # wh_ref: (tk, O)  bf16  chunk of (row-permuted) hidden1_weights
    # wg_ref: (O, O)   bf16  gating_weights with gating-BN scale folded in
    # gb_ref: (1, O)   f32   gating-BN bias
    # o_ref:  (B, O)   f32   resident output block, used as the accumulator
    k = pl.program_id(0)

    @pl.when(k == 0)
    def _():
        o_ref[...] = jnp.zeros_like(o_ref)

    o_ref[...] += jnp.dot(v_ref[...], wh_ref[...],
                          preferred_element_type=jnp.float32)

    @pl.when(k == pl.num_programs(0) - 1)
    def _():
        hidden = o_ref[...]                                            # (B, O)
        gates = jnp.dot(hidden.astype(wg_ref.dtype), wg_ref[...],
                        preferred_element_type=jnp.float32)            # (B, O)
        gates = jax.nn.sigmoid(gates + gb_ref[...])
        o_ref[...] = hidden * gates


# ----------------------------------------------------------------------------
# Wrapper
# ----------------------------------------------------------------------------
def _pick_tk(dk, max_tk=8192):
    """Largest power-of-two chunk <= max_tk that divides D*K (falls back to
    the full contraction if none divides)."""
    for cand in (8192, 4096, 2048, 1024, 512, 256, 128):
        if cand <= max_tk and dk % cand == 0:
            return cand
    return dk


def prepare_params(params, *, compute_dtype=jnp.bfloat16):
    """Fold the BN affines into the weights, permute hidden1_weights rows for
    the (K, D) vlad layout, transpose w2, and cast big operands to bf16."""
    wc = params["wc"]                                  # (D, K)
    D, K = wc.shape
    O = params["wh"].shape[1]

    wc_s = (wc * params["bn1_scale"].reshape(1, K)).astype(compute_dtype)
    b1 = params["bn1_bias"].reshape(1, K).astype(jnp.float32)
    w2t = jnp.transpose(params["w2"], (1, 0)).astype(compute_dtype)    # (K, D)

    # torch flattens a (D, K) vlad to row index d*K + k; our (K, D) layout
    # flattens to k*D + d, so permute hidden1_weights rows accordingly.
    wh_p = (params["wh"].reshape(D, K, O).transpose(1, 0, 2)
            .reshape(K * D, O).astype(compute_dtype))
    wg_s = (params["wg"] *
            params["gbn_scale"].reshape(1, O)).astype(compute_dtype)
    gb = params["gbn_bias"].reshape(1, O).astype(jnp.float32)
    return {"wc_s": wc_s, "b1": b1, "w2t": w2t,
            "wh_p": wh_p, "wg_s": wg_s, "gb": gb}


def netvlad_loupe_forward(x_nchw, params, *, feature_size, max_samples,
                          cluster_size, output_dim,
                          compute_dtype=jnp.bfloat16):
    B = x_nchw.shape[0]
    D, N, K, O = feature_size, max_samples, cluster_size, output_dim
    prep = prepare_params(params, compute_dtype=compute_dtype)

    # glue: NCHW (B, D, N, 1) -> (B, N, D), matches torch transpose(1,3)+view
    x_bnd = jnp.transpose(x_nchw, (0, 3, 2, 1)).reshape(B, N, D)
    x_bnd = x_bnd.astype(compute_dtype)

    # ---- kernel 1: per-batch soft-assignment + VLAD aggregation ------------
    # Weights (wc, b1, w2t) have constant block indices -> DMA'd once and kept
    # resident across the batch grid; only the (N, D) feature block streams.
    vlad = pl.pallas_call(
        _vlad_agg_kernel,
        out_shape=jax.ShapeDtypeStruct((B, K, D), compute_dtype),
        grid=(B,),
        in_specs=[
            pl.BlockSpec((1, N, D), lambda b: (b, 0, 0)),
            pl.BlockSpec((D, K), lambda b: (0, 0)),
            pl.BlockSpec((1, K), lambda b: (0, 0)),
            pl.BlockSpec((K, D), lambda b: (0, 0)),
        ],
        out_specs=pl.BlockSpec((1, K, D), lambda b: (b, 0, 0)),
        compiler_params=pltpu.CompilerParams(
            dimension_semantics=("parallel",)),
    )(x_bnd, prep["wc_s"], prep["b1"], prep["w2t"])

    # flatten (B, K, D) -> (B, K*D); wh rows were permuted above to match.
    vlad_flat = vlad.reshape(B, K * D)

    # ---- kernel 2: batched hidden projection + context gating --------------
    DK = K * D
    tk = _pick_tk(DK)
    out = pl.pallas_call(
        _head_kernel,
        out_shape=jax.ShapeDtypeStruct((B, O), jnp.float32),
        grid=(DK // tk,),
        in_specs=[
            pl.BlockSpec((B, tk), lambda k: (0, k)),
            pl.BlockSpec((tk, O), lambda k: (k, 0)),
            pl.BlockSpec((O, O), lambda k: (0, 0)),
            pl.BlockSpec((1, O), lambda k: (0, 0)),
        ],
        out_specs=pl.BlockSpec((B, O), lambda k: (0, 0)),
        compiler_params=pltpu.CompilerParams(
            dimension_semantics=("arbitrary",),
            vmem_limit_bytes=48 * 1024 * 1024),
    )(vlad_flat, prep["wh_p"], prep["wg_s"], prep["gb"])

    return out


# ----------------------------------------------------------------------------
# Pure-JAX reference (mirrors the PyTorch forward exactly, in f32)
# ----------------------------------------------------------------------------
def reference_forward(x_nchw, params, *, feature_size, max_samples,
                      cluster_size, output_dim):
    B = x_nchw.shape[0]
    D, N, K = feature_size, max_samples, cluster_size
    xb = jnp.transpose(x_nchw, (0, 3, 2, 1)).reshape(B, N, D)
    act = jnp.einsum("bnd,dk->bnk", xb, params["wc"])
    act = act * params["bn1_scale"] + params["bn1_bias"]
    act = jax.nn.softmax(act, axis=-1)
    a_sum = jnp.sum(act, axis=1, keepdims=True)                   # (B,1,K)
    a = a_sum * params["w2"][None]                                # (B,D,K)
    vlad = jnp.einsum("bnk,bnd->bkd", act, xb)                    # (B,K,D)
    vlad = jnp.transpose(vlad, (0, 2, 1)) - a                     # (B,D,K)
    vlad = vlad / jnp.maximum(
        jnp.linalg.norm(vlad, axis=1, keepdims=True), 1e-12)
    vf = vlad.reshape(B, D * K)
    vf = vf / jnp.maximum(jnp.linalg.norm(vf, axis=1, keepdims=True), 1e-12)
    hidden = vf @ params["wh"]
    gates = hidden @ params["wg"]
    gates = gates * params["gbn_scale"] + params["gbn_bias"]
    gates = jax.nn.sigmoid(gates)
    return hidden * gates


# ----------------------------------------------------------------------------
if __name__ == "__main__":
    # Small shapes consistent with the module's forward pass.
    B = 2            # batch
    D = 16           # feature_size
    N = 32           # max_samples
    K = 8            # cluster_size
    O = 32           # output_dim
    EPS = 1e-5       # BatchNorm eps

    key = jax.random.PRNGKey(0)
    ks = jax.random.split(key, 9)

    # Deterministic parameter init matching the module's shapes.
    wc = jax.random.normal(ks[0], (D, K), jnp.float32) / math.sqrt(D)
    w2 = (jax.random.normal(ks[1], (1, D, K), jnp.float32) / math.sqrt(D))[0]
    wh = jax.random.normal(ks[2], (K * D, O), jnp.float32) / math.sqrt(D)
    wg = jax.random.normal(ks[3], (O, O), jnp.float32) / math.sqrt(O)

    bn1_gamma = 1.0 + 0.1 * jax.random.normal(ks[4], (K,), jnp.float32)
    bn1_beta = 0.1 * jax.random.normal(ks[5], (K,), jnp.float32)
    gbn_gamma = 1.0 + 0.1 * jax.random.normal(ks[6], (O,), jnp.float32)
    gbn_beta = 0.1 * jax.random.normal(ks[7], (O,), jnp.float32)

    # eval-mode BatchNorm: running_mean=0, running_var=1 -> per-channel affine.
    bn1_scale = (bn1_gamma / jnp.sqrt(1.0 + EPS)).reshape(1, K)
    bn1_bias = bn1_beta.reshape(1, K)
    gbn_scale = (gbn_gamma / jnp.sqrt(1.0 + EPS)).reshape(1, O)
    gbn_bias = gbn_beta.reshape(1, O)

    params = {
        "wc": wc, "w2": w2, "wh": wh, "wg": wg,
        "bn1_scale": bn1_scale, "bn1_bias": bn1_bias,
        "gbn_scale": gbn_scale, "gbn_bias": gbn_bias,
    }

    # Input in PyTorch NCHW layout: (B, feature_size, max_samples, 1).
    x = jax.random.normal(ks[8], (B, D, N, 1), jnp.float32)

    out = netvlad_loupe_forward(
        x, params, feature_size=D, max_samples=N,
        cluster_size=K, output_dim=O)
    out = jax.block_until_ready(out)

    ref = reference_forward(
        x, params, feature_size=D, max_samples=N,
        cluster_size=K, output_dim=O)
    ref = jax.block_until_ready(ref)

    assert out.shape == (B, O), out.shape
    # bf16 weights/activations + approx reciprocal/rsqrt vs an exact f32
    # reference -> slightly relaxed tolerance.
    if not jnp.allclose(out, ref, atol=2e-2, rtol=2e-2):
        raise AssertionError(
            f"mismatch vs reference: max abs err = "
            f"{float(jnp.max(jnp.abs(out - ref)))}")

    print("KERNEL_OK")
</pallas_src>

<mosaic_0001>
module attributes {stable_mosaic.version = 11 : i64} {
  func.func @_vlad_agg_kernel(%arg0: i32, %arg1: memref<1x32x16xbf16, #tpu.memory_space<vmem>>, %arg2: memref<16x8xbf16, #tpu.memory_space<vmem>>, %arg3: memref<1x8xf32, #tpu.memory_space<vmem>>, %arg4: memref<8x16xbf16, #tpu.memory_space<vmem>>, %arg5: memref<1x8x16xbf16, #tpu.memory_space<vmem>>) attributes {dimension_semantics = [#tpu.dimension_semantics<parallel>], iteration_bounds = array<i64: 2>, scalar_prefetch = 0 : i64, scratch_operands = 0 : i64, tpu.core_type = #tpu.core_type<tc>, window_params = [{transform_indices = @transform_0, window_bounds = array<i64: 1, 32, 16>}, {pipeline_mode = #tpu.pipeline_mode<synchronous>, transform_indices = @transform_1, window_bounds = array<i64: 16, 8>}, {pipeline_mode = #tpu.pipeline_mode<synchronous>, transform_indices = @transform_2, window_bounds = array<i64: 1, 8>}, {pipeline_mode = #tpu.pipeline_mode<synchronous>, transform_indices = @transform_3, window_bounds = array<i64: 8, 16>}, {transform_indices = @transform_4, window_bounds = array<i64: 1, 8, 16>}]} {
    %c0 = arith.constant 0 : index
    %c0_0 = arith.constant 0 : index
    %c0_1 = arith.constant 0 : index
    %0 = vector.load %arg1[%c0, %c0_0, %c0_1] : memref<1x32x16xbf16, #tpu.memory_space<vmem>>, vector<1x32x16xbf16>
    %1 = vector.shape_cast %0 : vector<1x32x16xbf16> to vector<32x16xbf16>
    %c0_2 = arith.constant 0 : index
    %c0_3 = arith.constant 0 : index
    %2 = vector.load %arg2[%c0_2, %c0_3] : memref<16x8xbf16, #tpu.memory_space<vmem>>, vector<16x8xbf16>
    %cst = arith.constant dense<0.000000e+00> : vector<32x8xf32>
    %3 = tpu.matmul %1, %2, %cst {dimension_numbers = #tpu.dot_dimension_numbers<[1], [0], [0], [1], [0, 0, 1, 1], [], []>} : vector<32x16xbf16>, vector<16x8xbf16>, vector<32x8xf32> -> vector<32x8xf32>
    %c0_4 = arith.constant 0 : index
    %c0_5 = arith.constant 0 : index
    %4 = vector.load %arg3[%c0_4, %c0_5] : memref<1x8xf32, #tpu.memory_space<vmem>>, vector<1x8xf32>
    %5 = vector.broadcast %4 : vector<1x8xf32> to vector<32x8xf32>
    %6 = arith.addf %3, %5 : vector<32x8xf32>
    %cst_6 = arith.constant dense<0xFF800000> : vector<32xf32>
    %7 = vector.multi_reduction <maximumf>, %6, %cst_6 [1] : vector<32x8xf32> to vector<32xf32>
    %8 = vector.shape_cast %7 : vector<32xf32> to vector<32x1xf32>
    %9 = vector.broadcast %8 : vector<32x1xf32> to vector<32x8xf32>
    %10 = arith.subf %6, %9 : vector<32x8xf32>
    %11 = math.exp %10 : vector<32x8xf32>
    %cst_7 = arith.constant dense<0.000000e+00> : vector<32xf32>
    %12 = vector.multi_reduction <add>, %11, %cst_7 [1] : vector<32x8xf32> to vector<32xf32>
    %13 = vector.shape_cast %12 : vector<32xf32> to vector<32x1xf32>
    %14 = tpu.reciprocal %13 {approx = true} : vector<32x1xf32> -> vector<32x1xf32>
    %15 = vector.broadcast %14 : vector<32x1xf32> to vector<32x8xf32>
    %16 = arith.mulf %11, %15 : vector<32x8xf32>
    %cst_8 = arith.constant 1.000000e+00 : f32
    %17 = vector.broadcast %cst_8 : f32 to vector<32x1xf32>
    %cst_9 = arith.constant dense<0.000000e+00> : vector<8x1xf32>
    %18 = tpu.matmul %16, %17, %cst_9 {dimension_numbers = #tpu.dot_dimension_numbers<[0], [0], [1], [1], [0, 1, 1, 1], [], []>} : vector<32x8xf32>, vector<32x1xf32>, vector<8x1xf32> -> vector<8x1xf32>
    %c0_10 = arith.constant 0 : index
    %c0_11 = arith.constant 0 : index
    %19 = vector.load %arg4[%c0_10, %c0_11] : memref<8x16xbf16, #tpu.memory_space<vmem>>, vector<8x16xbf16>
    %20 = arith.extf %19 : vector<8x16xbf16> to vector<8x16xf32>
    %21 = vector.broadcast %18 : vector<8x1xf32> to vector<8x16xf32>
    %22 = arith.mulf %21, %20 : vector<8x16xf32>
    %23 = arith.truncf %16 : vector<32x8xf32> to vector<32x8xbf16>
    %cst_12 = arith.constant dense<0.000000e+00> : vector<8x16xf32>
    %24 = tpu.matmul %23, %1, %cst_12 {dimension_numbers = #tpu.dot_dimension_numbers<[0], [0], [1], [1], [0, 1, 1, 1], [], []>} : vector<32x8xbf16>, vector<32x16xbf16>, vector<8x16xf32> -> vector<8x16xf32>
    %25 = arith.subf %24, %22 : vector<8x16xf32>
    %26 = arith.mulf %25, %25 : vector<8x16xf32>
    %cst_13 = arith.constant dense<0.000000e+00> : vector<8xf32>
    %27 = vector.multi_reduction <add>, %26, %cst_13 [1] : vector<8x16xf32> to vector<8xf32>
    %28 = vector.shape_cast %27 : vector<8xf32> to vector<8x1xf32>
    %cst_14 = arith.constant 1.000000e-24 : f32
    %29 = vector.broadcast %cst_14 : f32 to vector<8x1xf32>
    %30 = arith.maximumf %28, %29 : vector<8x1xf32>
    %31 = math.rsqrt %30 : vector<8x1xf32>
    %32 = vector.broadcast %31 : vector<8x1xf32> to vector<8x16xf32>
    %33 = arith.mulf %25, %32 : vector<8x16xf32>
    %34 = arith.mulf %33, %33 : vector<8x16xf32>
    %35 = vector.shape_cast %34 : vector<8x16xf32> to vector<1x8x16xf32>
    %cst_15 = arith.constant dense<0.000000e+00> : vector<1xf32>
    %36 = vector.multi_reduction <add>, %35, %cst_15 [1, 2] : vector<1x8x16xf32> to vector<1xf32>
    %37 = vector.shape_cast %36 : vector<1xf32> to vector<1x1x1xf32>
    %38 = vector.extract %37[0, 0, 0] : f32 from vector<1x1x1xf32>
    %39 = vector.broadcast %38 : f32 to vector<1x1xf32>
    %cst_16 = arith.constant 1.000000e-24 : f32
    %40 = vector.broadcast %cst_16 : f32 to vector<1x1xf32>
    %41 = arith.maximumf %39, %40 : vector<1x1xf32>
    %42 = math.rsqrt %41 : vector<1x1xf32>
    %43 = vector.broadcast %42 : vector<1x1xf32> to vector<8x16xf32>
    %44 = arith.mulf %33, %43 : vector<8x16xf32>
    %45 = arith.truncf %44 : vector<8x16xf32> to vector<8x16xbf16>
    %c0_17 = arith.constant 0 : index
    %c0_18 = arith.constant 0 : index
    %c0_19 = arith.constant 0 : index
    %46 = vector.load %arg5[%c0_17, %c0_18, %c0_19] : memref<1x8x16xbf16, #tpu.memory_space<vmem>>, vector<1x8x16xbf16>
    %47 = vector.shape_cast %46 : vector<1x8x16xbf16> to vector<8x16xbf16>
    %48 = vector.shape_cast %45 : vector<8x16xbf16> to vector<1x8x16xbf16>
    tpu.vector_store %arg5[%c0_17, %c0_18, %c0_19], %48 {strides = array<i32>} : memref<1x8x16xbf16, #tpu.memory_space<vmem>>, vector<1x8x16xbf16>,
    return
  }
  func.func @transform_0(%arg0: i32) -> (i32, i32, i32) {
    %c0_i32 = arith.constant 0 : i32
    %c0_i32_0 = arith.constant 0 : i32
    %c0_i32_1 = arith.constant 0 : i32
    return %arg0, %c0_i32, %c0_i32_0 : i32, i32, i32
  }
  func.func @transform_1(%arg0: i32) -> (i32, i32) {
    %c0_i32 = arith.constant 0 : i32
    %c0_i32_0 = arith.constant 0 : i32
    %c0_i32_1 = arith.constant 0 : i32
    return %c0_i32, %c0_i32_0 : i32, i32
  }
  func.func @transform_2(%arg0: i32) -> (i32, i32) {
    %c0_i32 = arith.constant 0 : i32
    %c0_i32_0 = arith.constant 0 : i32
    %c0_i32_1 = arith.constant 0 : i32
    return %c0_i32, %c0_i32_0 : i32, i32
  }
  func.func @transform_3(%arg0: i32) -> (i32, i32) {
    %c0_i32 = arith.constant 0 : i32
    %c0_i32_0 = arith.constant 0 : i32
    %c0_i32_1 = arith.constant 0 : i32
    return %c0_i32, %c0_i32_0 : i32, i32
  }
  func.func @transform_4(%arg0: i32) -> (i32, i32, i32) {
    %c0_i32 = arith.constant 0 : i32
    %c0_i32_0 = arith.constant 0 : i32
    %c0_i32_1 = arith.constant 0 : i32
    return %arg0, %c0_i32, %c0_i32_0 : i32, i32, i32
  }
}

</mosaic_0001>

<llo_original>
// kernel: tpu_custom_call.1
$region0: #{tpu_custom_call.1}
  #allocation0 [shape = 'u32[]', space=smem, size = 0x4, offset = 0x4, fixed_abs, tag = 'smem constant byte address 0x4 - core index']
  #allocation1 [shape = 'u32[72,128]{1,0:T(1,128)}', space=vmem, size = 0x9000, scoped, tag = 'internal scratch']
  %s0 = inlined_call_operand.vmem [shape: bf16[2,32,16], index: 0, kind: input, shape index: {}]
  %s1 = inlined_call_operand.vmem [shape: bf16[16,8], index: 1, kind: input, shape index: {}]
  %s2 = inlined_call_operand.vmem [shape: f32[1,8], index: 2, kind: input, shape index: {}]
  %s3 = inlined_call_operand.vmem [shape: bf16[8,16], index: 3, kind: input, shape index: {}]
  %s4 = inlined_call_operand.hbm [shape: bf16[2,8,16], index: 4, kind: output, shape index: {}]
  %s5 = sld [smem:[#allocation0]]
  $region49: #{tpu_custom_call.1} parent=0
    _
  %s7 = ssub.s32 1, %s5
  %s8 = scalar_select 0, %s7, %s5
  $region1: #{tpu_custom_call.1} parent=0
    #allocation2 [shape = 'u8[4096]{0}', space=vmem, size = 0x1000, scoped, tag = 'output window, operand 0']
    #allocation3 [shape = 's32[2]{0}', space=sflag, size = 0x8, scoped, tag = 'scoped memory for tpu_custom_call.1']
    %9 = vsyncpa [#allocation3], 0
    %s10 = scalar_lea.sflag [#allocation3], 1
    %11 = vsyncpa %s10, 0
    loop: start=0, step=1, limit=4
    $region2: #{tpu_custom_call.1} parent=1 // loop_pre_header
      _
    $region3: #{tpu_custom_call.1} parent=1 // loop_header
      %s13 = sphi 0, %s17
      %p14 = scmp.ge.s32.totalorder %s13, 4
      %s23 = sphi 0, %s25
      %s26 = sphi 0, %s23
      %s27 = sphi 0, %s26
      %s43 = sphi 0, %s27
      %s47 = sphi 0, %s47
      %s49 = sphi 0, %s47
      %s50 = sphi 0, %s49
      %s64 = sphi 0, %s50
      %s68 = sphi 0, %s68
      %s70 = sphi 0, %s68
      %s71 = sphi 0, %s70
      %s85 = sphi 0, %s71
      %s89 = sphi 0, %s89
      %s91 = sphi 0, %s89
      %s92 = sphi 0, %s91
      %s106 = sphi 0, %s92
      %s112 = sphi 0, %s114
      %s115 = sphi 0, %s112
      %s116 = sphi 0, %s115
      %s132 = sphi 0, %s116
    $region4: #{tpu_custom_call.1} parent=1 // loop_header_branch
      %16 = sbr.rel (%p14) target = $region8
    $region5: #{tpu_custom_call.1} parent=1 // loop_body
      %s18 = ssub.s32 %s13, 1
      %s19 = ssub.s32 %s13, 2
      %s20 = sadd.s32 %s13, 1
      %s21 = ssub.s32 %s13, %s20
      %p22 = scmp.eq.s32.totalorder %s21, 0
      %s24 = sadd.s32 %s23, 1
      %s25 = scalar_select %p22, %s23, %s24
      %p28 = pneg %p22
      %p29 = scmp.eq.s32.totalorder %s13, 1
      %p30 = por %p28, %p29
      %p31 = scmp.ne.s32.totalorder %s23, %s26
      %p32 = scmp.eq.s32.totalorder %s13, 0
      %p33 = por %p31, %p32
      %p34 = scmp.ne.s32.totalorder %s23, %s26
      %p35 = scmp.eq.s32.totalorder %s18, 1
      %p36 = por %p34, %p35
      %p37 = scmp.ne.s32.totalorder %s26, %s27
      %p38 = scmp.eq.s32.totalorder %s18, 0
      %p39 = por %p37, %p38
      %p40 = scmp.ne.s32.totalorder %s26, %s27
      %p41 = scmp.eq.s32.totalorder %s19, 1
      %p42 = por %p40, %p41
      %p44 = scmp.ne.s32.totalorder %s27, %s43
      %p45 = scmp.eq.s32.totalorder %s19, 0
      %p46 = por %p44, %p45
      %s48 = sadd.s32 %s47, 1
      %p51 = scmp.eq.s32.totalorder %s13, 1
      %p52 = scmp.ne.s32.totalorder %s47, %s49
      %p53 = scmp.eq.s32.totalorder %s13, 0
      %p54 = por %p52, %p53
      %p55 = scmp.ne.s32.totalorder %s47, %s49
      %p56 = scmp.eq.s32.totalorder %s18, 1
      %p57 = por %p55, %p56
      %p58 = scmp.ne.s32.totalorder %s49, %s50
      %p59 = scmp.eq.s32.totalorder %s18, 0
      %p60 = por %p58, %p59
      %p61 = scmp.ne.s32.totalorder %s49, %s50
      %p62 = scmp.eq.s32.totalorder %s19, 1
      %p63 = por %p61, %p62
      %p65 = scmp.ne.s32.totalorder %s50, %s64
      %p66 = scmp.eq.s32.totalorder %s19, 0
      %p67 = por %p65, %p66
      %s69 = sadd.s32 %s68, 1
      %p72 = scmp.eq.s32.totalorder %s13, 1
      %p73 = scmp.ne.s32.totalorder %s68, %s70
      %p74 = scmp.eq.s32.totalorder %s13, 0
      %p75 = por %p73, %p74
      %p76 = scmp.ne.s32.totalorder %s68, %s70
      %p77 = scmp.eq.s32.totalorder %s18, 1
      %p78 = por %p76, %p77
      %p79 = scmp.ne.s32.totalorder %s70, %s71
      %p80 = scmp.eq.s32.totalorder %s18, 0
      %p81 = por %p79, %p80
      %p82 = scmp.ne.s32.totalorder %s70, %s71
      %p83 = scmp.eq.s32.totalorder %s19, 1
      %p84 = por %p82, %p83
      %p86 = scmp.ne.s32.totalorder %s71, %s85
      %p87 = scmp.eq.s32.totalorder %s19, 0
      %p88 = por %p86, %p87
      %s90 = sadd.s32 %s89, 1
      %p93 = scmp.eq.s32.totalorder %s13, 1
      %p94 = scmp.ne.s32.totalorder %s89, %s91
      %p95 = scmp.eq.s32.totalorder %s13, 0
      %p96 = por %p94, %p95
      %p97 = scmp.ne.s32.totalorder %s89, %s91
      %p98 = scmp.eq.s32.totalorder %s18, 1
      %p99 = por %p97, %p98
      %p100 = scmp.ne.s32.totalorder %s91, %s92
      %p101 = scmp.eq.s32.totalorder %s18, 0
      %p102 = por %p100, %p101
      %p103 = scmp.ne.s32.totalorder %s91, %s92
      %p104 = scmp.eq.s32.totalorder %s19, 1
      %p105 = por %p103, %p104
      %p107 = scmp.ne.s32.totalorder %s92, %s106
      %p108 = scmp.eq.s32.totalorder %s19, 0
      %p109 = por %p107, %p108
      %s110 = ssub.s32 %s13, %s20
      %p111 = scmp.eq.s32.totalorder %s110, 0
      %s113 = sadd.s32 %s112, 1
      %s114 = scalar_select %p111, %s112, %s113
      %p117 = pneg %p111
      %p118 = scmp.eq.s32.totalorder %s13, 1
      %p119 = por %p117, %p118
      %p120 = scmp.ne.s32.totalorder %s112, %s115
      %p121 = scmp.eq.s32.totalorder %s13, 0
      %p122 = por %p120, %p121
      %p123 = scmp.ne.s32.totalorder %s112, %s115
      %p124 = scmp.eq.s32.totalorder %s18, 1
      %p125 = por %p123, %p124
      %p126 = scmp.ne.s32.totalorder %s115, %s116
      %p127 = scmp.eq.s32.totalorder %s18, 0
      %p128 = por %p126, %p127
      %p129 = scmp.ne.s32.totalorder %s115, %s116
      %p130 = scmp.eq.s32.totalorder %s19, 1
      %p131 = por %p129, %p130
      %p133 = scmp.ne.s32.totalorder %s116, %s132
      %p134 = scmp.eq.s32.totalorder %s19, 0
      %p135 = por %p133, %p134
      %p136 = scmp.le.s32.totalorder 1, %s13
      %p137 = scmp.lt.s32.totalorder %s13, 3
      %p138 = pnand %p136, %p137
      %p139 = pneg %p138
      // Predicated region
      $region9: #{tpu_custom_call.1} parent=5 // pred_check
        _
      $region10: #{tpu_custom_call.1} parent=5 // pred_check_branch
        %141 = sbr.rel (%p138) target = $region12
      $region11: #{tpu_custom_call.1} parent=5 // pred_region
        %s142 = ssub.s32 %s13, 1
        // Predicated region
        $region13: #{tpu_custom_call.1} parent=11 // pred_check
          %p143 = pneg %p60
        $region14: #{tpu_custom_call.1} parent=11 // pred_check_branch
          %145 = sbr.rel (%p143) target = $region16
        $region15: #{tpu_custom_call.1} parent=11 // pred_region
          _
        $region16: #{tpu_custom_call.1} parent=11 // pred_fallthru
          _
        // Predicated region
        $region17: #{tpu_custom_call.1} parent=11 // pred_check
          %p146 = pneg %p81
        $region18: #{tpu_custom_call.1} parent=11 // pred_check_branch
          %148 = sbr.rel (%p146) target = $region20
        $region19: #{tpu_custom_call.1} parent=11 // pred_region
          _
        $region20: #{tpu_custom_call.1} parent=11 // pred_fallthru
          _
        // Predicated region
        $region21: #{tpu_custom_call.1} parent=11 // pred_check
          %p149 = pneg %p102
        $region22: #{tpu_custom_call.1} parent=11 // pred_check_branch
          %151 = sbr.rel (%p149) target = $region24
        $region23: #{tpu_custom_call.1} parent=11 // pred_region
          _
        $region24: #{tpu_custom_call.1} parent=11 // pred_fallthru
          _
      $region12: #{tpu_custom_call.1} parent=5 // pred_fallthru
        _
      %p152 = scmp.lt.s32.totalorder %s13, 2
      // Predicated region
      $region25: #{tpu_custom_call.1} parent=5 // pred_check
        %p153 = pneg %p152
      $region26: #{tpu_custom_call.1} parent=5 // pred_check_branch
        %155 = sbr.rel (%p153) target = $region28
      $region27: #{tpu_custom_call.1} parent=5 // pred_region
        // Predicated region
        $region29: #{tpu_custom_call.1} parent=27 // pred_check
          %p156 = pneg %p33
        $region30: #{tpu_custom_call.1} parent=27 // pred_check_branch
          %158 = sbr.rel (%p156) target = $region32
        $region31: #{tpu_custom_call.1} parent=27 // pred_region
          %p159 = scmp.lt.s32.totalorder %s13, 1
          %s160 = scalar_select %p159, %s13, 1
          %s161 = smul.addr %s160, 4
          %s162 = smul.addr %s161, 4
          %s163 = scalar_lea.vmem %s0, %s162
        $region32: #{tpu_custom_call.1} parent=27 // pred_fallthru
          _
      $region28: #{tpu_custom_call.1} parent=5 // pred_fallthru
        _
      %p164 = scmp.le.s32.totalorder 1, %s13
      %p165 = scmp.lt.s32.totalorder %s13, 3
      %p166 = pnand %p164, %p165
      %p167 = pneg %p166
      // Predicated region
      $region33: #{tpu_custom_call.1} parent=5 // pred_check
        _
      $region34: #{tpu_custom_call.1} parent=5 // pred_check_branch
        %169 = sbr.rel (%p166) target = $region36
      $region35: #{tpu_custom_call.1} parent=5 // pred_region
        %s170 = ssub.s32 %s13, 1
        %p171 = scmp.lt.s32.totalorder %s18, 1
        %s172 = scalar_select %p171, %s18, 1
        %s173 = smul.addr %s172, 4
        %s174 = smul.addr %s173, 4
        %s175 = scalar_lea.vmem %s0, %s174
        %p176 = pneg %p39
        %p177 = pneg %p36
        %p178 = pneg %p60
        %p179 = pneg %p57
        %p180 = pneg %p81
        %p181 = pneg %p78
        %p182 = pneg %p102
        %p183 = pneg %p99
        %p184 = pneg %p128
        %p185 = pneg %p125
        %s186 = sand.u32 %s115, 1
        %s187 = scalar_lea.sflag [#allocation3], %s186
        %s188 = sand.u32 %s115, 1
        %s189 = smul.addr %s188, 4
        %s190 = scalar_lea.vmem [#allocation2], %s189
        %p191 = scmp.lt.s32.totalorder %s18, 1
        %s192 = scalar_select %p191, %s18, 1
        %s193 = smul.addr %s192, 4
        %s194 = smul.addr %s193, 4
        %s195 = scalar_lea.vmem %s0, %s194
        %v197 = vld [vmem:[%s195] sm:$0xf]
        %v198 = vld [vmem:[%s195 + $0x4] sm:$0xf]
        %v199 = vld [vmem:[%s195 + $0x8] sm:$0xf]
        %v200 = vld [vmem:[%s195 + $0xc] sm:$0xf]
        %v201 = vld [vmem:[%s1] sm:$0xf]
        %v202 = vld [vmem:[%s1 + $0x4] sm:$0xf]
        %v203 = vld [vmem:[%s2] sm:$0x1]
        %v205 = vperm.slane %v203, 0
        %v211 = vunpack.c.l.b16 %v197
        %v212 = vunpack.c.l.b16 %v198
        %v213 = vunpack.c.l.b16 %v199
        %v214 = vunpack.c.l.b16 %v200
        %v215 = vpack.c.b16 %v212, %v211
        %v216 = vpack.c.b16 %v214, %v213
        %v219 = vunpack.c.l.b16 %v201
        %v220 = vunpack.c.l.b16 %v202
        %v221 = vpack.c.b16 %v220, %v219
        %vm223 = vcmask 130048
        %v225 = vsel %vm223, %v215, 0
        %v228 = vsel %vm223, %v216, 0
        %230 = vmatpush.bf16.msra.mxu0 0
        %231 = vmatpush.bf16.msra.mxu0 0
        %232 = vmatpush.bf16.msra.mxu0 0
        %233 = vmatpush.bf16.msra.mxu0 0
        %234 = vmatpush.bf16.msra.mxu0 0
        %235 = vmatpush.bf16.msra.mxu0 0
        %236 = vmatpush.bf16.msra.mxu0 0
        %237 = vmatpush.bf16.msra.mxu0 %v221
        %238 = vmatmul.bf16.gmra.mxu0 %v225
        %v239 = vpop.f32.mrf.mxu0
        %v240 = vadd.f32 %v205, %v239
        %v241 = vpop.f32.mrf.mxu0
        %v242 = vadd.f32 %v205, %v241
        %243 = vmatmul.bf16.gmra.mxu0 %v228
        %v244 = vpop.f32.mrf.mxu0
        %v245 = vadd.f32 %v205, %v244
        %v246 = vpop.f32.mrf.mxu0
        %v247 = vadd.f32 %v205, %v246
        %248 = vdwg.mxu0
        %vm249 = vcmask 64512
        %v250 = vsel %vm249, %v240, -inf
        %251 = vmax.xlane.f32.xlu0 %v250
        %v252 = vpop.xlane.xlu0 %251
        %v253 = vsel %vm249, %v242, -inf
        %254 = vmax.xlane.f32.xlu0 %v253
        %v255 = vpop.xlane.xlu0 %254
        %v256 = vsel %vm249, %v245, -inf
        %257 = vmax.xlane.f32.xlu0 %v256
        %v258 = vpop.xlane.xlu0 %257
        %v259 = vsel %vm249, %v247, -inf
        %260 = vmax.xlane.f32.xlu0 %v259
        %v261 = vpop.xlane.xlu0 %260
        %v262 = vsub.f32 %v240, %v252
        %v263 = vsub.f32 %v242, %v255
        %v264 = vsub.f32 %v245, %v258
        %v265 = vsub.f32 %v247, %v261
        %v266 = vmul.f32 %v262, 1.442695
        %v267 = vpow.pop %v266
        %v268 = vmul.f32 %v263, 1.442695
        %v269 = vpow.pop %v268
        %v270 = vmul.f32 %v264, 1.442695
        %v271 = vpow.pop %v270
        %v272 = vmul.f32 %v265, 1.442695
        %v273 = vpow.pop %v272
        %v274 = vsel %vm249, %v267, 0.0
        %275 = vadd.xlane.f32.xlu0 %v274
        %v276 = vpop.xlane.xlu0 %275
        %v277 = vsel %vm249, %v269, 0.0
        %278 = vadd.xlane.f32.xlu0 %v277
        %v279 = vpop.xlane.xlu0 %278
        %v280 = vsel %vm249, %v271, 0.0
        %281 = vadd.xlane.f32.xlu0 %v280
        %v282 = vpop.xlane.xlu0 %281
        %v283 = vsel %vm249, %v273, 0.0
        %284 = vadd.xlane.f32.xlu0 %v283
        %v285 = vpop.xlane.xlu0 %284
        %v286 = vrcp.pop %v276
        %v287 = vrcp.pop %v279
        %v288 = vrcp.pop %v282
        %v289 = vrcp.pop %v285
        %v290 = vmul.f32 %v267, %v286
        %v291 = vmul.f32 %v269, %v287
        %v292 = vmul.f32 %v271, %v288
        %v293 = vmul.f32 %v273, %v289
        %294 = vxpose.xlu0.b32.start [1/16] %v290, 128
        %295 = vxpose.xlu0.b32.cont [2/16] %v291, 128
        %296 = vxpose.xlu0.b32.cont [3/16] %v292, 128
        %297 = vxpose.xlu0.b32.cont [4/16] %v293, 128
        %298 = vxpose.xlu0.b32.cont [5/16] 0.0, 128
        %299 = vxpose.xlu0.b32.cont [6/16] 0.0, 128
        %300 = vxpose.xlu0.b32.cont [7/16] 0.0, 128
        %301 = vxpose.xlu0.b32.cont [8/16] 0.0, 128
        %302 = vxpose.xlu0.b32.cont [9/16] 0.0, 128
        %303 = vxpose.xlu0.b32.cont [10/16] 0.0, 128
        %304 = vxpose.xlu0.b32.cont [11/16] 0.0, 128
        %305 = vxpose.xlu0.b32.cont [12/16] 0.0, 128
        %306 = vxpose.xlu0.b32.cont [13/16] 0.0, 128
        %307 = vxpose.xlu0.b32.cont [14/16] 0.0, 128
        %308 = vxpose.xlu0.b32.cont [15/16] 0.0, 128
        %309 = vxpose.xlu0.b32.end [16/16] 0.0, 128
        %v310 = vpop.trf.xlu0
        %v311 = vpop.trf.xlu0
        %v312 = vpop.trf.xlu0
        %v313 = vpop.trf.xlu0
        %v314 = vpop.trf.xlu0
        %v315 = vpop.trf.xlu0
        %v316 = vpop.trf.xlu0
        %v317 = vpop.trf.xlu0
        %v318 = vpop.trf.xlu0
        %v319 = vpop.trf.xlu0
        %v320 = vpop.trf.xlu0
        %v321 = vpop.trf.xlu0
        %v322 = vpop.trf.xlu0
        %v323 = vpop.trf.xlu0
        %v324 = vpop.trf.xlu0
        %v325 = vpop.trf.xlu0
        %vm326 = vcmask 261120
        %v328 = vsel %vm326, %v310, 0
        %330 = vmatpush.msra.mxu0 0.0
        %331 = vmatpush.msra.mxu0 0.0
        %332 = vmatpush.msra.mxu0 0.0
        %333 = vmatpush.msra.mxu0 0.0
        %334 = vmatpush.msra.mxu0 0.0
        %335 = vmatpush.msra.mxu0 0.0
        %336 = vmatpush.msra.mxu0 0.0
        %337 = vmatpush.msra.mxu0 0.0
        %338 = vmatpush.msra.mxu0 0.0
        %339 = vmatpush.msra.mxu0 0.0
        %340 = vmatpush.msra.mxu0 0.0
        %341 = vmatpush.msra.mxu0 0.0
        %342 = vmatpush.msra.mxu0 1.0
        %343 = vmatpush.msra.mxu0 1.0
        %344 = vmatpush.msra.mxu0 1.0
        %345 = vmatpush.msra.mxu0 1.0
        %346 = vmatmul.f32.gmra.mxu0 %v328
        %v347 = vpop.f32.mrf.mxu0
        %v348 = vadd.f32 0.0, %v347
        %349 = vdwg.mxu0
        %v350 = vld [vmem:[%s3] sm:$0xf]
        %v351 = vunpack.c.l.bf16 %v350
        %353 = vset.pattern.permute.xlu0 0
        %354 = vperm.xlu0 %353, %v348
        %v355 = vpop.permute.xlu0 %354
        %v357 = vmul.f32 %v355, %v351
        %v358 = vpack.c.bf16 %v291, %v290
        %v359 = vpack.c.bf16 %v293, %v292
        %360 = vxpose.xlu0.c.b16.start [1/8] %v358, 128
        %361 = vxpose.xlu0.c.b16.cont [2/8] %v359, 128
        %362 = vxpose.xlu0.c.b16.cont [3/8] 0, 128
        %363 = vxpose.xlu0.c.b16.cont [4/8] 0, 128
        %364 = vxpose.xlu0.c.b16.cont [5/8] 0, 128
        %365 = vxpose.xlu0.c.b16.cont [6/8] 0, 128
        %366 = vxpose.xlu0.c.b16.cont [7/8] 0, 128
        %367 = vxpose.xlu0.c.b16.end [8/8] 0, 128
        %v368 = vpop.trf.xlu0
        %v369 = vpop.trf.xlu0
        %v370 = vpop.trf.xlu0
        %v371 = vpop.trf.xlu0
        %v372 = vpop.trf.xlu0
        %v373 = vpop.trf.xlu0
        %v374 = vpop.trf.xlu0
        %v375 = vpop.trf.xlu0
        %v379 = vsel %vm326, %v368, 0
        %381 = vmatpush.bf16.msra.mxu0 0
        %382 = vmatpush.bf16.msra.mxu0 0
        %383 = vmatpush.bf16.msra.mxu0 0
        %384 = vmatpush.bf16.msra.mxu0 0
        %385 = vmatpush.bf16.msra.mxu0 0
        %386 = vmatpush.bf16.msra.mxu0 0
        %387 = vmatpush.bf16.msra.mxu0 %v216
        %388 = vmatpush.bf16.msra.mxu0 %v215
        %389 = vmatmul.bf16.gmra.mxu0 %v379
        %v390 = vpop.f32.mrf.mxu0
        %v391 = vadd.f32 0.0, %v390
        %v392 = vpop.f32.mrf.mxu0
        %393 = vdwg.mxu0
        %v394 = vsub.f32 %v391, %v357
        %v395 = vmul.f32 %v394, %v394
        %v396 = vsel %vm223, %v395, 0.0
        %397 = vadd.xlane.f32.xlu0 %v396
        %v398 = vpop.xlane.xlu0 %397
        %v399 = vmax.f32 %v398, 1e-24
        %v400 = vrsqrt.pop %v399
        %v401 = vmul.f32 %v400, %v399
        %v402 = vmul.f32 %v401, %v400
        %v403 = vmul.f32 0.5, %v402
        %v404 = vsub.f32 1.5, %v403
        %v405 = vmul.f32 %v400, %v404
        %vm406 = vweird.f32 %v399
        %vm407 = vweird.f32 %v400
        %vm408 = vmor %vm406, %vm407
        %v409 = vsel %vm408, %v400, %v405
        %v410 = vmul.f32 %v394, %v409
        %v411 = vmul.f32 %v410, %v410
        %v412 = vsel %vm223, %v411, 0.0
        %413 = vadd.xlane.f32.xlu0 %v412
        %v414 = vpop.xlane.xlu0 %413
        %v415 = vrot.slane %v414, 4
        %v416 = vadd.f32 %v414, %v415
        %v417 = vrot.slane %v416, 2
        %v418 = vadd.f32 %v416, %v417
        %v419 = vrot.slane %v418, 1
        %v420 = vadd.f32 %v418, %v419
        %s421 = vtos %v420
        %v422 = vstv %s421
        %v423 = vmax.f32 %v422, 1e-24
        %v424 = vrsqrt.pop %v423
        %v425 = vmul.f32 %v424, %v423
        %v426 = vmul.f32 %v425, %v424
        %v427 = vmul.f32 0.5, %v426
        %v428 = vsub.f32 1.5, %v427
        %v429 = vmul.f32 %v424, %v428
        %vm430 = vweird.f32 %v423
        %vm431 = vweird.f32 %v424
        %vm432 = vmor %vm430, %vm431
        %v433 = vsel %vm432, %v424, %v429
        %v434 = vmul.f32 %v410, %v433
        %v435 = vpack.c.bf16 %v434, %v434
        %vm436 = vcmask 125952
        %437 = vst.msk [vmem:[%s190] sm:$0xf] %vm436, %v435
        %s438 = sand.u32 %s115, 1
        %s439 = scalar_lea.sflag [#allocation3], %s438
        %s440 = sand.u32 %s115, 1
        %s441 = smul.addr %s440, 4
        %s442 = scalar_lea.vmem [#allocation2], %s441
        // Predicated region
        $region37: #{tpu_custom_call.1} parent=35 // pred_check
          %p443 = pneg %p125
        $region38: #{tpu_custom_call.1} parent=35 // pred_check_branch
          %445 = sbr.rel (%p443) target = $region40
        $region39: #{tpu_custom_call.1} parent=35 // pred_region
          %447 = vsyncadd %s439, 0
          %s448 = smul.addr %s18, 4
          %s449 = scalar_lea.hbm %s4, %s448
          %s451 = sshll.u32 %s442, 4
          %s452 = int_to_ptr.vmem [resolvable:$true] %s451
          %s453 = sshll.u32 %s449, 4
          %s454 = int_to_ptr.hbm [resolvable:$true] %s453
          %456 = dma.vmem_to_hbm [thread:$0]  %s452, 64, %s454, %s439
        $region40: #{tpu_custom_call.1} parent=35 // pred_fallthru
          _
      $region36: #{tpu_custom_call.1} parent=5 // pred_fallthru
        _
      %p457 = scmp.le.s32.totalorder 2, %s13
      // Predicated region
      $region41: #{tpu_custom_call.1} parent=5 // pred_check
        %p458 = pneg %p457
      $region42: #{tpu_custom_call.1} parent=5 // pred_check_branch
        %460 = sbr.rel (%p458) target = $region44
      $region43: #{tpu_custom_call.1} parent=5 // pred_region
        %s461 = ssub.s32 %s13, 2
        // Predicated region
        $region45: #{tpu_custom_call.1} parent=43 // pred_check
          %p462 = pneg %p131
        $region46: #{tpu_custom_call.1} parent=43 // pred_check_branch
          %464 = sbr.rel (%p462) target = $region48
        $region47: #{tpu_custom_call.1} parent=43 // pred_region
          %s465 = sand.u32 %s116, 1
          %s466 = scalar_lea.sflag [#allocation3], %s465
          %s467 = sand.u32 %s116, 1
          %s468 = smul.addr %s467, 4
          %s469 = scalar_lea.vmem [#allocation2], %s468
          %471 = dma.done %s466, 64
        $region48: #{tpu_custom_call.1} parent=43 // pred_fallthru
          _
      $region44: #{tpu_custom_call.1} parent=5 // pred_fallthru
        _
    $region6: #{tpu_custom_call.1} parent=1 // loop_footer
      %s17 = sadd.s32 1, %s13
    $region7: #{tpu_custom_call.1} parent=1 // loop_footer_branch
      %12 = sbr.rel target = $region3
    $region8: #{tpu_custom_call.1} parent=1 // loop_exit
      _
    %472 = vsyncpa [#allocation3], 1
    %s473 = scalar_lea.sflag [#allocation3], 1
    %474 = vsyncpa %s473, 1

</llo_original>
